<compile_context>
chip_gen: v6e
topology: v6e:2x2x1
jax: 0.10.0
libtpu: 0.0.40
codegen_flags: <defaults>
</compile_context>

<pallas_src>
import math

import jax
import jax.numpy as jnp
from jax import lax
from jax.experimental import pallas as pl
from jax.experimental.pallas import tpu as pltpu


def _round_up(a, m):
    return ((a + m - 1) // m) * m


def _make_kernel(cin):
    inv_sqrt2 = 1.0 / math.sqrt(2.0)

    def kernel(xcat_ref, we_ref, wo_ref, b_ref, g_ref, bt_ref, out_ref):
        xcat = xcat_ref[...]                      # (rt, 3*Cin) = [x[m-1] | x[m] | x[m+1]]
        x_even = xcat[:, : 2 * cin]               # [x[m-1] | x[m]]
        x_odd = xcat[:, cin:]                     # [x[m]   | x[m+1]]

        bias = b_ref[...]
        y_even = jnp.dot(x_even, we_ref[...],
                         preferred_element_type=jnp.float32) + bias
        y_odd = jnp.dot(x_odd, wo_ref[...],
                        preferred_element_type=jnp.float32) + bias

        gamma = g_ref[...]
        beta = bt_ref[...]

        def gelu_ln(y):
            # exact (erf) GELU, matching torch.nn.GELU(approximate='none')
            g = 0.5 * y * (1.0 + lax.erf(y * inv_sqrt2))
            mu = jnp.mean(g, axis=-1, keepdims=True)
            var = jnp.maximum(
                jnp.mean(g * g, axis=-1, keepdims=True) - mu * mu, 0.0)
            return (g - mu) * lax.rsqrt(var + 1e-5) * gamma + beta

        # single lane-dense (rt, 2*Cout) store: [even | odd]
        out_ref[...] = jnp.concatenate(
            [gelu_ln(y_even), gelu_ln(y_odd)], axis=-1).astype(out_ref.dtype)

    return kernel


def upsample_layer(x, weight, bias, gamma, beta, *, row_tile=256,
                   matmul_dtype=None):
    """x: (B, T, Cin) float32.  weight: (Cin, Cout, 4) (torch ConvTranspose1d layout).
    Returns (B, 2T, Cout)."""
    B, T, Cin = x.shape
    Cout = weight.shape[1]

    M = B * T
    # effective row tile: multiple of 8, no larger than the (rounded) row count
    rt = _round_up(min(row_tile, _round_up(M, 8)), 8)
    Mp = _round_up(M, rt)

    # shifted views, per batch (zero padded at the batch time boundaries)
    x_prev = jnp.pad(x, ((0, 0), (1, 0), (0, 0)))[:, :T]     # x[m-1]
    x_next = jnp.pad(x, ((0, 0), (0, 1), (0, 0)))[:, 1:]     # x[m+1]
    xcat = jnp.concatenate([x_prev, x, x_next], axis=-1).reshape(M, 3 * Cin)
    if Mp != M:
        xcat = jnp.pad(xcat, ((0, Mp - M), (0, 0)))          # padded rows discarded later

    # pre-concatenated weights: 2 matmuls with K = 2*Cin instead of 4 with K = Cin
    w_even = jnp.concatenate([weight[:, :, 3], weight[:, :, 1]], axis=0)  # (2Cin, Cout)
    w_odd = jnp.concatenate([weight[:, :, 2], weight[:, :, 0]], axis=0)   # (2Cin, Cout)

    if matmul_dtype is not None:
        xcat = xcat.astype(matmul_dtype)
        w_even = w_even.astype(matmul_dtype)
        w_odd = w_odd.astype(matmul_dtype)

    b2 = bias.reshape(1, Cout).astype(jnp.float32)
    g2 = gamma.reshape(1, Cout).astype(jnp.float32)
    be2 = beta.reshape(1, Cout).astype(jnp.float32)

    grid = (Mp // rt,)
    row_spec = pl.BlockSpec((rt, 3 * Cin), lambda i: (i, 0))
    w_spec = pl.BlockSpec((2 * Cin, Cout), lambda i: (0, 0))
    vec_spec = pl.BlockSpec((1, Cout), lambda i: (0, 0))
    out_spec = pl.BlockSpec((rt, 2 * Cout), lambda i: (i, 0))

    out = pl.pallas_call(
        _make_kernel(Cin),
        out_shape=jax.ShapeDtypeStruct((Mp, 2 * Cout), x.dtype),
        grid=grid,
        in_specs=[row_spec, w_spec, w_spec, vec_spec, vec_spec, vec_spec],
        out_specs=out_spec,
        compiler_params=pltpu.CompilerParams(
            dimension_semantics=("parallel",)),
    )(xcat, w_even, w_odd, b2, g2, be2)

    # [even | odd] per row  ->  interleaved (B, 2T, Cout); pure contiguous reshape.
    y = out[:M].reshape(B, T, 2, Cout).reshape(B, 2 * T, Cout)
    return y


def _reference(x, weight, bias, gamma, beta):
    """Pure-JAX reference matching torch semantics (NCH conv layout internally)."""
    K, stride, pad = 4, 2, 1
    x_nch = jnp.transpose(x, (0, 2, 1))                      # (B, Cin, T)
    # ConvTranspose1d == regular conv over stride-dilated input with flipped kernel
    w_conv = jnp.transpose(weight, (1, 0, 2))[:, :, ::-1]    # (Cout, Cin, K)
    y = lax.conv_general_dilated(
        x_nch, w_conv,
        window_strides=(1,),
        padding=[(K - 1 - pad, K - 1 - pad)],
        lhs_dilation=(stride,),
        dimension_numbers=("NCH", "OIH", "NCH"))
    y = y + bias[None, :, None]
    y = jnp.transpose(y, (0, 2, 1))                          # (B, 2T, Cout)
    g = 0.5 * y * (1.0 + lax.erf(y / math.sqrt(2.0)))
    mu = jnp.mean(g, axis=-1, keepdims=True)
    var = jnp.mean((g - mu) ** 2, axis=-1, keepdims=True)
    return (g - mu) * lax.rsqrt(var + 1e-5) * gamma + beta


if __name__ == "__main__":
    B, T, Cin, Cout = 2, 8, 16, 32

    key = jax.random.PRNGKey(0)
    kx, kw, kb, kx2 = jax.random.split(key, 4)
    x = jax.random.normal(kx, (B, T, Cin), dtype=jnp.float32)
    # ConvTranspose1d weight shape: (in_channels, out_channels, kernel_size)
    weight = 0.1 * jax.random.normal(kw, (Cin, Cout, 4), dtype=jnp.float32)
    bias = 0.1 * jax.random.normal(kb, (Cout,), dtype=jnp.float32)
    gamma = jnp.ones((Cout,), dtype=jnp.float32)   # LayerNorm defaults
    beta = jnp.zeros((Cout,), dtype=jnp.float32)

    y = jax.block_until_ready(upsample_layer(x, weight, bias, gamma, beta))
    y_ref = _reference(x, weight, bias, gamma, beta)
    assert y.shape == (B, 2 * T, Cout), y.shape
    assert jnp.allclose(y, y_ref, atol=1e-4, rtol=1e-4), \
        float(jnp.max(jnp.abs(y - y_ref)))

    # second check: larger, non-tile-aligned row count -> multi-step grid + row padding
    T2 = 300
    x2 = jax.random.normal(kx2, (B, T2, Cin), dtype=jnp.float32)
    y2 = jax.block_until_ready(upsample_layer(x2, weight, bias, gamma, beta))
    y2_ref = _reference(x2, weight, bias, gamma, beta)
    assert y2.shape == (B, 2 * T2, Cout), y2.shape
    assert jnp.allclose(y2, y2_ref, atol=1e-4, rtol=1e-4), \
        float(jnp.max(jnp.abs(y2 - y2_ref)))

    print("KERNEL_OK")
</pallas_src>

<mosaic_0001>
module attributes {stable_mosaic.version = 11 : i64} {
  func.func @kernel(%arg0: i32, %arg1: memref<16x48xf32, #tpu.memory_space<vmem>>, %arg2: memref<32x32xf32, #tpu.memory_space<vmem>>, %arg3: memref<32x32xf32, #tpu.memory_space<vmem>>, %arg4: memref<1x32xf32, #tpu.memory_space<vmem>>, %arg5: memref<1x32xf32, #tpu.memory_space<vmem>>, %arg6: memref<1x32xf32, #tpu.memory_space<vmem>>, %arg7: memref<16x64xf32, #tpu.memory_space<vmem>>) attributes {dimension_semantics = [#tpu.dimension_semantics<parallel>], iteration_bounds = array<i64: 1>, scalar_prefetch = 0 : i64, scratch_operands = 0 : i64, tpu.core_type = #tpu.core_type<tc>, window_params = [{transform_indices = @transform_0, window_bounds = array<i64: 16, 48>}, {pipeline_mode = #tpu.pipeline_mode<synchronous>, transform_indices = @transform_1, window_bounds = array<i64: 32, 32>}, {pipeline_mode = #tpu.pipeline_mode<synchronous>, transform_indices = @transform_2, window_bounds = array<i64: 32, 32>}, {pipeline_mode = #tpu.pipeline_mode<synchronous>, transform_indices = @transform_3, window_bounds = array<i64: 1, 32>}, {pipeline_mode = #tpu.pipeline_mode<synchronous>, transform_indices = @transform_4, window_bounds = array<i64: 1, 32>}, {pipeline_mode = #tpu.pipeline_mode<synchronous>, transform_indices = @transform_5, window_bounds = array<i64: 1, 32>}, {transform_indices = @transform_6, window_bounds = array<i64: 16, 64>}]} {
    %c0 = arith.constant 0 : index
    %c0_0 = arith.constant 0 : index
    %0 = vector.load %arg1[%c0, %c0_0] : memref<16x48xf32, #tpu.memory_space<vmem>>, vector<16x48xf32>
    %1 = vector.extract_strided_slice %0 {offsets = [0, 0], sizes = [16, 32], strides = [1, 1]} : vector<16x48xf32> to vector<16x32xf32>
    %2 = vector.extract_strided_slice %0 {offsets = [0, 16], sizes = [16, 32], strides = [1, 1]} : vector<16x48xf32> to vector<16x32xf32>
    %c0_1 = arith.constant 0 : index
    %c0_2 = arith.constant 0 : index
    %3 = vector.load %arg4[%c0_1, %c0_2] : memref<1x32xf32, #tpu.memory_space<vmem>>, vector<1x32xf32>
    %c0_3 = arith.constant 0 : index
    %c0_4 = arith.constant 0 : index
    %4 = vector.load %arg2[%c0_3, %c0_4] : memref<32x32xf32, #tpu.memory_space<vmem>>, vector<32x32xf32>
    %cst = arith.constant dense<0.000000e+00> : vector<16x32xf32>
    %5 = tpu.matmul %1, %4, %cst {dimension_numbers = #tpu.dot_dimension_numbers<[1], [0], [0], [1], [0, 0, 1, 1], [], []>} : vector<16x32xf32>, vector<32x32xf32>, vector<16x32xf32> -> vector<16x32xf32>
    %6 = vector.broadcast %3 : vector<1x32xf32> to vector<16x32xf32>
    %7 = arith.addf %5, %6 : vector<16x32xf32>
    %c0_5 = arith.constant 0 : index
    %c0_6 = arith.constant 0 : index
    %8 = vector.load %arg3[%c0_5, %c0_6] : memref<32x32xf32, #tpu.memory_space<vmem>>, vector<32x32xf32>
    %cst_7 = arith.constant dense<0.000000e+00> : vector<16x32xf32>
    %9 = tpu.matmul %2, %8, %cst_7 {dimension_numbers = #tpu.dot_dimension_numbers<[1], [0], [0], [1], [0, 0, 1, 1], [], []>} : vector<16x32xf32>, vector<32x32xf32>, vector<16x32xf32> -> vector<16x32xf32>
    %10 = vector.broadcast %3 : vector<1x32xf32> to vector<16x32xf32>
    %11 = arith.addf %9, %10 : vector<16x32xf32>
    %c0_8 = arith.constant 0 : index
    %c0_9 = arith.constant 0 : index
    %12 = vector.load %arg5[%c0_8, %c0_9] : memref<1x32xf32, #tpu.memory_space<vmem>>, vector<1x32xf32>
    %c0_10 = arith.constant 0 : index
    %c0_11 = arith.constant 0 : index
    %13 = vector.load %arg6[%c0_10, %c0_11] : memref<1x32xf32, #tpu.memory_space<vmem>>, vector<1x32xf32>
    %cst_12 = arith.constant 5.000000e-01 : f32
    %14 = vector.broadcast %cst_12 : f32 to vector<16x32xf32>
    %15 = arith.mulf %14, %7 : vector<16x32xf32>
    %cst_13 = arith.constant 0.707106769 : f32
    %16 = vector.broadcast %cst_13 : f32 to vector<16x32xf32>
    %17 = arith.mulf %7, %16 : vector<16x32xf32>
    %18 = math.erf %17 : vector<16x32xf32>
    %cst_14 = arith.constant 1.000000e+00 : f32
    %19 = vector.broadcast %cst_14 : f32 to vector<16x32xf32>
    %20 = arith.addf %19, %18 : vector<16x32xf32>
    %21 = arith.mulf %15, %20 : vector<16x32xf32>
    %cst_15 = arith.constant dense<0.000000e+00> : vector<16xf32>
    %22 = vector.multi_reduction <add>, %21, %cst_15 [1] : vector<16x32xf32> to vector<16xf32>
    %23 = vector.shape_cast %22 : vector<16xf32> to vector<16x1xf32>
    %cst_16 = arith.constant 3.200000e+01 : f32
    %24 = vector.broadcast %cst_16 : f32 to vector<16x1xf32>
    %25 = arith.divf %23, %24 : vector<16x1xf32>
    %26 = arith.mulf %21, %21 : vector<16x32xf32>
    %cst_17 = arith.constant dense<0.000000e+00> : vector<16xf32>
    %27 = vector.multi_reduction <add>, %26, %cst_17 [1] : vector<16x32xf32> to vector<16xf32>
    %28 = vector.shape_cast %27 : vector<16xf32> to vector<16x1xf32>
    %cst_18 = arith.constant 3.200000e+01 : f32
    %29 = vector.broadcast %cst_18 : f32 to vector<16x1xf32>
    %30 = arith.divf %28, %29 : vector<16x1xf32>
    %31 = arith.mulf %25, %25 : vector<16x1xf32>
    %32 = arith.subf %30, %31 : vector<16x1xf32>
    %cst_19 = arith.constant 0.000000e+00 : f32
    %33 = vector.broadcast %cst_19 : f32 to vector<16x1xf32>
    %34 = arith.maximumf %32, %33 : vector<16x1xf32>
    %35 = vector.broadcast %25 : vector<16x1xf32> to vector<16x32xf32>
    %36 = arith.subf %21, %35 : vector<16x32xf32>
    %cst_20 = arith.constant 9.99999974E-6 : f32
    %37 = vector.broadcast %cst_20 : f32 to vector<16x1xf32>
    %38 = arith.addf %34, %37 : vector<16x1xf32>
    %39 = math.rsqrt %38 : vector<16x1xf32>
    %40 = vector.broadcast %39 : vector<16x1xf32> to vector<16x32xf32>
    %41 = arith.mulf %36, %40 : vector<16x32xf32>
    %42 = vector.broadcast %12 : vector<1x32xf32> to vector<16x32xf32>
    %43 = arith.mulf %41, %42 : vector<16x32xf32>
    %44 = vector.broadcast %13 : vector<1x32xf32> to vector<16x32xf32>
    %45 = arith.addf %43, %44 : vector<16x32xf32>
    %cst_21 = arith.constant 5.000000e-01 : f32
    %46 = vector.broadcast %cst_21 : f32 to vector<16x32xf32>
    %47 = arith.mulf %46, %11 : vector<16x32xf32>
    %cst_22 = arith.constant 0.707106769 : f32
    %48 = vector.broadcast %cst_22 : f32 to vector<16x32xf32>
    %49 = arith.mulf %11, %48 : vector<16x32xf32>
    %50 = math.erf %49 : vector<16x32xf32>
    %cst_23 = arith.constant 1.000000e+00 : f32
    %51 = vector.broadcast %cst_23 : f32 to vector<16x32xf32>
    %52 = arith.addf %51, %50 : vector<16x32xf32>
    %53 = arith.mulf %47, %52 : vector<16x32xf32>
    %cst_24 = arith.constant dense<0.000000e+00> : vector<16xf32>
    %54 = vector.multi_reduction <add>, %53, %cst_24 [1] : vector<16x32xf32> to vector<16xf32>
    %55 = vector.shape_cast %54 : vector<16xf32> to vector<16x1xf32>
    %cst_25 = arith.constant 3.200000e+01 : f32
    %56 = vector.broadcast %cst_25 : f32 to vector<16x1xf32>
    %57 = arith.divf %55, %56 : vector<16x1xf32>
    %58 = arith.mulf %53, %53 : vector<16x32xf32>
    %cst_26 = arith.constant dense<0.000000e+00> : vector<16xf32>
    %59 = vector.multi_reduction <add>, %58, %cst_26 [1] : vector<16x32xf32> to vector<16xf32>
    %60 = vector.shape_cast %59 : vector<16xf32> to vector<16x1xf32>
    %cst_27 = arith.constant 3.200000e+01 : f32
    %61 = vector.broadcast %cst_27 : f32 to vector<16x1xf32>
    %62 = arith.divf %60, %61 : vector<16x1xf32>
    %63 = arith.mulf %57, %57 : vector<16x1xf32>
    %64 = arith.subf %62, %63 : vector<16x1xf32>
    %cst_28 = arith.constant 0.000000e+00 : f32
    %65 = vector.broadcast %cst_28 : f32 to vector<16x1xf32>
    %66 = arith.maximumf %64, %65 : vector<16x1xf32>
    %67 = vector.broadcast %57 : vector<16x1xf32> to vector<16x32xf32>
    %68 = arith.subf %53, %67 : vector<16x32xf32>
    %cst_29 = arith.constant 9.99999974E-6 : f32
    %69 = vector.broadcast %cst_29 : f32 to vector<16x1xf32>
    %70 = arith.addf %66, %69 : vector<16x1xf32>
    %71 = math.rsqrt %70 : vector<16x1xf32>
    %72 = vector.broadcast %71 : vector<16x1xf32> to vector<16x32xf32>
    %73 = arith.mulf %68, %72 : vector<16x32xf32>
    %74 = vector.broadcast %12 : vector<1x32xf32> to vector<16x32xf32>
    %75 = arith.mulf %73, %74 : vector<16x32xf32>
    %76 = vector.broadcast %13 : vector<1x32xf32> to vector<16x32xf32>
    %77 = arith.addf %75, %76 : vector<16x32xf32>
    %78 = tpu.concatenate %45, %77 in 1 : vector<16x32xf32>, vector<16x32xf32> -> vector<16x64xf32>
    %c0_30 = arith.constant 0 : index
    %c0_31 = arith.constant 0 : index
    %79 = vector.load %arg7[%c0_30, %c0_31] : memref<16x64xf32, #tpu.memory_space<vmem>>, vector<16x64xf32>
    tpu.vector_store %arg7[%c0_30, %c0_31], %78 {strides = array<i32>} : memref<16x64xf32, #tpu.memory_space<vmem>>, vector<16x64xf32>,
    return
  }
  func.func @transform_0(%arg0: i32) -> (i32, i32) {
    %c0_i32 = arith.constant 0 : i32
    %c0_i32_0 = arith.constant 0 : i32
    return %arg0, %c0_i32 : i32, i32
  }
  func.func @transform_1(%arg0: i32) -> (i32, i32) {
    %c0_i32 = arith.constant 0 : i32
    %c0_i32_0 = arith.constant 0 : i32
    %c0_i32_1 = arith.constant 0 : i32
    return %c0_i32, %c0_i32_0 : i32, i32
  }
  func.func @transform_2(%arg0: i32) -> (i32, i32) {
    %c0_i32 = arith.constant 0 : i32
    %c0_i32_0 = arith.constant 0 : i32
    %c0_i32_1 = arith.constant 0 : i32
    return %c0_i32, %c0_i32_0 : i32, i32
  }
  func.func @transform_3(%arg0: i32) -> (i32, i32) {
    %c0_i32 = arith.constant 0 : i32
    %c0_i32_0 = arith.constant 0 : i32
    %c0_i32_1 = arith.constant 0 : i32
    return %c0_i32, %c0_i32_0 : i32, i32
  }
  func.func @transform_4(%arg0: i32) -> (i32, i32) {
    %c0_i32 = arith.constant 0 : i32
    %c0_i32_0 = arith.constant 0 : i32
    %c0_i32_1 = arith.constant 0 : i32
    return %c0_i32, %c0_i32_0 : i32, i32
  }
  func.func @transform_5(%arg0: i32) -> (i32, i32) {
    %c0_i32 = arith.constant 0 : i32
    %c0_i32_0 = arith.constant 0 : i32
    %c0_i32_1 = arith.constant 0 : i32
    return %c0_i32, %c0_i32_0 : i32, i32
  }
  func.func @transform_6(%arg0: i32) -> (i32, i32) {
    %c0_i32 = arith.constant 0 : i32
    %c0_i32_0 = arith.constant 0 : i32
    return %arg0, %c0_i32 : i32, i32
  }
}

</mosaic_0001>

<llo_original>
// kernel: tpu_custom_call.1
$region0: #{tpu_custom_call.1}
  #allocation0 [shape = 'u32[]', space=smem, size = 0x4, offset = 0x4, fixed_abs, tag = 'smem constant byte address 0x4 - core index']
  #allocation1 [shape = 'u32[144,128]{1,0:T(1,128)}', space=vmem, size = 0x12000, scoped, tag = 'internal scratch']
  %s0 = inlined_call_operand.hbm [shape: f32[16,48], index: 0, kind: input, shape index: {}]
  %s1 = inlined_call_operand.hbm [shape: f32[32,32], index: 1, kind: input, shape index: {}]
  %s2 = inlined_call_operand.hbm [shape: f32[32,32], index: 2, kind: input, shape index: {}]
  %s3 = inlined_call_operand.vmem [shape: f32[1,32], index: 3, kind: input, shape index: {}]
  %s4 = inlined_call_operand.vmem [shape: f32[1,32], index: 4, kind: input, shape index: {}]
  %s5 = inlined_call_operand.vmem [shape: f32[1,32], index: 5, kind: input, shape index: {}]
  %s6 = inlined_call_operand.hbm [shape: f32[16,64], index: 6, kind: output, shape index: {}]
  %s7 = sld [smem:[#allocation0]]
  $region46: #{tpu_custom_call.1} parent=0
    _
  %s9 = ssub.s32 1, %s7
  %s10 = scalar_select 0, %s9, %s7
  $region1: #{tpu_custom_call.1} parent=0
    #allocation2 [shape = 'u8[8192]{0}', space=vmem, size = 0x2000, scoped, tag = 'input window, operand 0, single buffered']
    #allocation3 [shape = 's32[1]{0}', space=sflag, size = 0x4, scoped, tag = 'scoped memory for tpu_custom_call.1']
    #allocation4 [shape = 's32[1]{0}', space=sflag, size = 0x4, scoped, tag = 'scoped memory for tpu_custom_call.1']
    #allocation5 [shape = 'u8[16384]{0}', space=vmem, size = 0x4000, scoped, tag = 'input window, operand 1, single buffered']
    #allocation6 [shape = 's32[1]{0}', space=sflag, size = 0x4, scoped, tag = 'scoped memory for tpu_custom_call.1']
    #allocation7 [shape = 'u8[16384]{0}', space=vmem, size = 0x4000, scoped, tag = 'input window, operand 2, single buffered']
    #allocation8 [shape = 'u8[8192]{0}', space=vmem, size = 0x2000, scoped, tag = 'output window, operand 0, single buffered']
    %11 = vsyncpa [#allocation3], 0
    %12 = vsyncpa [#allocation6], 0
    %13 = vsyncpa [#allocation4], 0
    // Predicated region
    $region2: #{tpu_custom_call.1} parent=1 // pred_check
      _
    $region3: #{tpu_custom_call.1} parent=1 // pred_check_branch
      %15 = sbr.rel (0) target = $region5
    $region4: #{tpu_custom_call.1} parent=1 // pred_region
      %s17 = ssub.s32 256, 256
      %18 = vsyncadd [#allocation3], %s17
      %s19 = sshll.u32 [#allocation2], 4
      %s20 = int_to_ptr.vmem [resolvable:$true] %s19
      %25 = dma.hbm_to_vmem [thread:$0]  %s0, 256, %s20, [#allocation3], 128, 128, 8
    $region5: #{tpu_custom_call.1} parent=1 // pred_fallthru
      _
    // Predicated region
    $region6: #{tpu_custom_call.1} parent=1 // pred_check
      _
    $region7: #{tpu_custom_call.1} parent=1 // pred_check_branch
      %27 = sbr.rel (0) target = $region9
    $region8: #{tpu_custom_call.1} parent=1 // pred_region
      %s29 = ssub.s32 512, 512
      %30 = vsyncadd [#allocation6], %s29
      %s31 = sshll.u32 [#allocation5], 4
      %s32 = int_to_ptr.vmem [resolvable:$true] %s31
      %37 = dma.hbm_to_vmem [thread:$0]  %s1, 512, %s32, [#allocation6], 128, 128, 8
    $region9: #{tpu_custom_call.1} parent=1 // pred_fallthru
      _
    // Predicated region
    $region10: #{tpu_custom_call.1} parent=1 // pred_check
      _
    $region11: #{tpu_custom_call.1} parent=1 // pred_check_branch
      %39 = sbr.rel (0) target = $region13
    $region12: #{tpu_custom_call.1} parent=1 // pred_region
      %s41 = ssub.s32 512, 512
      %42 = vsyncadd [#allocation6], %s41
      %s43 = sshll.u32 [#allocation7], 4
      %s44 = int_to_ptr.vmem [resolvable:$true] %s43
      %49 = dma.hbm_to_vmem [thread:$0]  %s2, 512, %s44, [#allocation6], 128, 128, 8
    $region13: #{tpu_custom_call.1} parent=1 // pred_fallthru
      _
    // Predicated region
    $region14: #{tpu_custom_call.1} parent=1 // pred_check
      _
    $region15: #{tpu_custom_call.1} parent=1 // pred_check_branch
      %51 = sbr.rel (0) target = $region17
    $region16: #{tpu_custom_call.1} parent=1 // pred_region
      _
    $region17: #{tpu_custom_call.1} parent=1 // pred_fallthru
      _
    // Predicated region
    $region18: #{tpu_custom_call.1} parent=1 // pred_check
      _
    $region19: #{tpu_custom_call.1} parent=1 // pred_check_branch
      %53 = sbr.rel (0) target = $region21
    $region20: #{tpu_custom_call.1} parent=1 // pred_region
      _
    $region21: #{tpu_custom_call.1} parent=1 // pred_fallthru
      _
    // Predicated region
    $region22: #{tpu_custom_call.1} parent=1 // pred_check
      _
    $region23: #{tpu_custom_call.1} parent=1 // pred_check_branch
      %55 = sbr.rel (0) target = $region25
    $region24: #{tpu_custom_call.1} parent=1 // pred_region
      _
    $region25: #{tpu_custom_call.1} parent=1 // pred_fallthru
      _
    // Predicated region
    $region26: #{tpu_custom_call.1} parent=1 // pred_check
      _
    $region27: #{tpu_custom_call.1} parent=1 // pred_check_branch
      %57 = sbr.rel (0) target = $region29
    $region28: #{tpu_custom_call.1} parent=1 // pred_region
      %58 = dma.done [#allocation3], 256
    $region29: #{tpu_custom_call.1} parent=1 // pred_fallthru
      _
    // Predicated region
    $region30: #{tpu_custom_call.1} parent=1 // pred_check
      _
    $region31: #{tpu_custom_call.1} parent=1 // pred_check_branch
      %60 = sbr.rel (0) target = $region33
    $region32: #{tpu_custom_call.1} parent=1 // pred_region
      %61 = dma.done [#allocation6], 512
    $region33: #{tpu_custom_call.1} parent=1 // pred_fallthru
      _
    // Predicated region
    $region34: #{tpu_custom_call.1} parent=1 // pred_check
      _
    $region35: #{tpu_custom_call.1} parent=1 // pred_check_branch
      %63 = sbr.rel (0) target = $region37
    $region36: #{tpu_custom_call.1} parent=1 // pred_region
      %64 = dma.done [#allocation6], 512
    $region37: #{tpu_custom_call.1} parent=1 // pred_fallthru
      _
    %v65 = vld [vmem:[#allocation2] sm:$0xff]
    %v66 = vld [vmem:[#allocation2 + $0x8] sm:$0xff]
    %v67 = vld [vmem:[%s3] sm:$0x1]
    %v68 = vld [vmem:[#allocation5] sm:$0xff]
    %v69 = vld [vmem:[#allocation5 + $0x8] sm:$0xff]
    %v70 = vld [vmem:[#allocation5 + $0x10] sm:$0xff]
    %v71 = vld [vmem:[#allocation5 + $0x18] sm:$0xff]
    %v73 = vlaneseq
    %v74 = vshrl.u32 %v73, 7
    %v75 = vsub.s32 0, %v74
    %v76 = vrot.slane %v67, %v75
    %vm78 = vcmask 261120
    %v80 = vsel %vm78, %v65, 0
    %v83 = vsel %vm78, %v66, 0
    %85 = vmatprep.subr.mxu0 0.0
    %86 = vmatpush1.msra.mxu0 0.0
    %87 = vmatprep.subr.mxu0 0.0
    %88 = vmatpush1.msra.mxu0 0.0
    %89 = vmatprep.subr.mxu0 0.0
    %90 = vmatpush1.msra.mxu0 0.0
    %91 = vmatprep.subr.mxu0 0.0
    %92 = vmatpush1.msra.mxu0 0.0
    %93 = vmatprep.subr.mxu0 0.0
    %94 = vmatpush1.msra.mxu0 0.0
    %95 = vmatprep.subr.mxu0 0.0
    %96 = vmatpush1.msra.mxu0 0.0
    %97 = vmatprep.subr.mxu0 0.0
    %98 = vmatpush1.msra.mxu0 0.0
    %99 = vmatprep.subr.mxu0 0.0
    %100 = vmatpush1.msra.mxu0 0.0
    %101 = vmatprep.subr.mxu0 0.0
    %102 = vmatpush1.msra.mxu0 0.0
    %103 = vmatprep.subr.mxu0 0.0
    %104 = vmatpush1.msra.mxu0 0.0
    %105 = vmatprep.subr.mxu0 0.0
    %106 = vmatpush1.msra.mxu0 0.0
    %107 = vmatprep.subr.mxu0 0.0
    %108 = vmatpush1.msra.mxu0 0.0
    %109 = vmatprep.subr.mxu0 0.0
    %110 = vmatpush1.msra.mxu0 %v71
    %111 = vmatprep.subr.mxu0 0.0
    %112 = vmatpush1.msra.mxu0 %v70
    %113 = vmatprep.subr.mxu0 0.0
    %114 = vmatpush1.msra.mxu0 %v69
    %115 = vmatprep.subr.mxu0 0.0
    %116 = vmatpush1.msra.mxu0 %v68
    %117 = vmatprep.subr.mxu0 0.0
    %118 = vmatpush2.msra.mxu0 0.0
    %119 = vmatprep.subr.mxu0 0.0
    %120 = vmatpush2.msra.mxu0 0.0
    %121 = vmatprep.subr.mxu0 0.0
    %122 = vmatpush2.msra.mxu0 0.0
    %123 = vmatprep.subr.mxu0 0.0
    %124 = vmatpush2.msra.mxu0 0.0
    %125 = vmatprep.subr.mxu0 0.0
    %126 = vmatpush2.msra.mxu0 0.0
    %127 = vmatprep.subr.mxu0 0.0
    %128 = vmatpush2.msra.mxu0 0.0
    %129 = vmatprep.subr.mxu0 0.0
    %130 = vmatpush2.msra.mxu0 0.0
    %131 = vmatprep.subr.mxu0 0.0
    %132 = vmatpush2.msra.mxu0 0.0
    %133 = vmatprep.subr.mxu0 0.0
    %134 = vmatpush2.msra.mxu0 0.0
    %135 = vmatprep.subr.mxu0 0.0
    %136 = vmatpush2.msra.mxu0 0.0
    %137 = vmatprep.subr.mxu0 0.0
    %138 = vmatpush2.msra.mxu0 0.0
    %139 = vmatprep.subr.mxu0 0.0
    %140 = vmatpush2.msra.mxu0 0.0
    %141 = vmatprep.subr.mxu0 0.0
    %142 = vmatpush2.msra.mxu0 0.0
    %143 = vmatprep.subr.mxu0 0.0
    %144 = vmatpush2.msra.mxu0 0.0
    %145 = vmatprep.subr.mxu0 0.0
    %146 = vmatpush2.msra.mxu0 0.0
    %147 = vmatprep.subr.mxu0 0.0
    %148 = vmatpush2.msra.mxu0 0.0
    %149 = vmatprep.mubr.f32.mxu0 0.0
    %150 = vmatmul.mubr.f32.gmra.mxu0 %v80
    %v151 = vpop.f32.mrf.mxu0
    %v152 = vadd.f32 %v76, %v151
    %v153 = vpop.f32.mrf.mxu0
    %154 = vmatprep.mubr.f32.mxu0 0.0
    %155 = vmatmul.mubr.f32.gmra.mxu0 %v83
    %v156 = vpop.f32.mrf.mxu0
    %v157 = vadd.f32 %v76, %v156
    %v158 = vpop.f32.mrf.mxu0
    %159 = vdwg.mxu0
    %v160 = vld [vmem:[#allocation7] sm:$0xff]
    %v161 = vld [vmem:[#allocation7 + $0x8] sm:$0xff]
    %v162 = vld [vmem:[#allocation7 + $0x10] sm:$0xff]
    %v163 = vld [vmem:[#allocation7 + $0x18] sm:$0xff]
    %164 = vrot.lane.b32.xlu0 %v65, 112
    %v165 = vpop.permute.xlu0 %164
    %166 = vrot.lane.b32.xlu0 %v66, 112
    %v167 = vpop.permute.xlu0 %166
    %v168 = vsel %vm78, %v165, 0
    %v170 = vsel %vm78, %v167, 0
    %172 = vmatprep.subr.mxu0 0.0
    %173 = vmatpush1.msra.mxu0 0.0
    %174 = vmatprep.subr.mxu0 0.0
    %175 = vmatpush1.msra.mxu0 0.0
    %176 = vmatprep.subr.mxu0 0.0
    %177 = vmatpush1.msra.mxu0 0.0
    %178 = vmatprep.subr.mxu0 0.0
    %179 = vmatpush1.msra.mxu0 0.0
    %180 = vmatprep.subr.mxu0 0.0
    %181 = vmatpush1.msra.mxu0 0.0
    %182 = vmatprep.subr.mxu0 0.0
    %183 = vmatpush1.msra.mxu0 0.0
    %184 = vmatprep.subr.mxu0 0.0
    %185 = vmatpush1.msra.mxu0 0.0
    %186 = vmatprep.subr.mxu0 0.0
    %187 = vmatpush1.msra.mxu0 0.0
    %188 = vmatprep.subr.mxu0 0.0
    %189 = vmatpush1.msra.mxu0 0.0
    %190 = vmatprep.subr.mxu0 0.0
    %191 = vmatpush1.msra.mxu0 0.0
    %192 = vmatprep.subr.mxu0 0.0
    %193 = vmatpush1.msra.mxu0 0.0
    %194 = vmatprep.subr.mxu0 0.0
    %195 = vmatpush1.msra.mxu0 0.0
    %196 = vmatprep.subr.mxu0 0.0
    %197 = vmatpush1.msra.mxu0 %v163
    %198 = vmatprep.subr.mxu0 0.0
    %199 = vmatpush1.msra.mxu0 %v162
    %200 = vmatprep.subr.mxu0 0.0
    %201 = vmatpush1.msra.mxu0 %v161
    %202 = vmatprep.subr.mxu0 0.0
    %203 = vmatpush1.msra.mxu0 %v160
    %204 = vmatprep.subr.mxu0 0.0
    %205 = vmatpush2.msra.mxu0 0.0
    %206 = vmatprep.subr.mxu0 0.0
    %207 = vmatpush2.msra.mxu0 0.0
    %208 = vmatprep.subr.mxu0 0.0
    %209 = vmatpush2.msra.mxu0 0.0
    %210 = vmatprep.subr.mxu0 0.0
    %211 = vmatpush2.msra.mxu0 0.0
    %212 = vmatprep.subr.mxu0 0.0
    %213 = vmatpush2.msra.mxu0 0.0
    %214 = vmatprep.subr.mxu0 0.0
    %215 = vmatpush2.msra.mxu0 0.0
    %216 = vmatprep.subr.mxu0 0.0
    %217 = vmatpush2.msra.mxu0 0.0
    %218 = vmatprep.subr.mxu0 0.0
    %219 = vmatpush2.msra.mxu0 0.0
    %220 = vmatprep.subr.mxu0 0.0
    %221 = vmatpush2.msra.mxu0 0.0
    %222 = vmatprep.subr.mxu0 0.0
    %223 = vmatpush2.msra.mxu0 0.0
    %224 = vmatprep.subr.mxu0 0.0
    %225 = vmatpush2.msra.mxu0 0.0
    %226 = vmatprep.subr.mxu0 0.0
    %227 = vmatpush2.msra.mxu0 0.0
    %228 = vmatprep.subr.mxu0 0.0
    %229 = vmatpush2.msra.mxu0 0.0
    %230 = vmatprep.subr.mxu0 0.0
    %231 = vmatpush2.msra.mxu0 0.0
    %232 = vmatprep.subr.mxu0 0.0
    %233 = vmatpush2.msra.mxu0 0.0
    %234 = vmatprep.subr.mxu0 0.0
    %235 = vmatpush2.msra.mxu0 0.0
    %236 = vmatprep.mubr.f32.mxu0 0.0
    %237 = vmatmul.mubr.f32.gmra.mxu0 %v168
    %v238 = vpop.f32.mrf.mxu0
    %v239 = vadd.f32 %v76, %v238
    %v240 = vpop.f32.mrf.mxu0
    %241 = vmatprep.mubr.f32.mxu0 0.0
    %242 = vmatmul.mubr.f32.gmra.mxu0 %v170
    %v243 = vpop.f32.mrf.mxu0
    %v244 = vadd.f32 %v76, %v243
    %v245 = vpop.f32.mrf.mxu0
    %246 = vdwg.mxu0
    %v247 = vld [vmem:[%s4] sm:$0x1]
    %v248 = vld [vmem:[%s5] sm:$0x1]
    %v249 = vmul.f32 %v152, 0.5
    %v250 = vmul.f32 %v157, 0.5
    %v251 = vmul.f32 %v152, 0.70710677
    %v252 = vmul.f32 %v157, 0.70710677
    %v253 = verf.f32.pop %v251
    %v254 = verf.f32.pop %v252
    %v255 = vadd.f32 %v253, 1.0
    %v256 = vadd.f32 %v254, 1.0
    %v257 = vmul.f32 %v249, %v255
    %v258 = vmul.f32 %v250, %v256
    %v259 = vsel %vm78, %v257, 0.0
    %260 = vadd.xlane.f32.xlu0 %v259
    %v261 = vpop.xlane.xlu0 %260
    %v262 = vsel %vm78, %v258, 0.0
    %263 = vadd.xlane.f32.xlu0 %v262
    %v264 = vpop.xlane.xlu0 %263
    %v265 = vrcp.pop 32.0
    %v266 = vmul.f32 %v261, %v265
    %v267 = vmul.f32 %v264, %v265
    %v268 = vmul.f32 %v257, %v257
    %v269 = vmul.f32 %v258, %v258
    %v270 = vsel %vm78, %v268, 0.0
    %271 = vadd.xlane.f32.xlu0 %v270
    %v272 = vpop.xlane.xlu0 %271
    %v273 = vsel %vm78, %v269, 0.0
    %274 = vadd.xlane.f32.xlu0 %v273
    %v275 = vpop.xlane.xlu0 %274
    %v276 = vmul.f32 %v272, %v265
    %v277 = vmul.f32 %v275, %v265
    %v278 = vmul.f32 %v266, %v266
    %v279 = vmul.f32 %v267, %v267
    %v280 = vsub.f32 %v276, %v278
    %v281 = vsub.f32 %v277, %v279
    %v282 = vmax.f32 %v280, 0.0
    %v283 = vmax.f32 %v281, 0.0
    %v284 = vsub.f32 %v257, %v266
    %v285 = vsub.f32 %v258, %v267
    %v286 = vadd.f32 %v282, 1e-05
    %v287 = vadd.f32 %v283, 1e-05
    %v288 = vrsqrt.pop %v286
    %v289 = vrsqrt.pop %v287
    %v290 = vmul.f32 %v284, %v288
    %v291 = vmul.f32 %v285, %v289
    %v293 = vlaneseq
    %v294 = vshrl.u32 %v293, 7
    %v295 = vsub.s32 0, %v294
    %v296 = vrot.slane %v247, %v295
    %v298 = vmul.f32 %v290, %v296
    %v299 = vmul.f32 %v291, %v296
    %v301 = vlaneseq
    %v302 = vshrl.u32 %v301, 7
    %v303 = vsub.s32 0, %v302
    %v304 = vrot.slane %v248, %v303
    %v306 = vadd.f32 %v298, %v304
    %v307 = vadd.f32 %v299, %v304
    %v308 = vmul.f32 %v239, 0.5
    %v309 = vmul.f32 %v244, 0.5
    %v310 = vmul.f32 %v239, 0.70710677
    %v311 = vmul.f32 %v244, 0.70710677
    %v312 = verf.f32.pop %v310
    %v313 = verf.f32.pop %v311
    %v314 = vadd.f32 %v312, 1.0
    %v315 = vadd.f32 %v313, 1.0
    %v316 = vmul.f32 %v308, %v314
    %v317 = vmul.f32 %v309, %v315
    %v318 = vsel %vm78, %v316, 0.0
    %319 = vadd.xlane.f32.xlu0 %v318
    %v320 = vpop.xlane.xlu0 %319
    %v321 = vsel %vm78, %v317, 0.0
    %322 = vadd.xlane.f32.xlu0 %v321
    %v323 = vpop.xlane.xlu0 %322
    %v324 = vmul.f32 %v320, %v265
    %v325 = vmul.f32 %v323, %v265
    %v326 = vmul.f32 %v316, %v316
    %v327 = vmul.f32 %v317, %v317
    %v328 = vsel %vm78, %v326, 0.0
    %329 = vadd.xlane.f32.xlu0 %v328
    %v330 = vpop.xlane.xlu0 %329
    %v331 = vsel %vm78, %v327, 0.0
    %332 = vadd.xlane.f32.xlu0 %v331
    %v333 = vpop.xlane.xlu0 %332
    %v334 = vmul.f32 %v330, %v265
    %v335 = vmul.f32 %v333, %v265
    %v336 = vmul.f32 %v324, %v324
    %v337 = vmul.f32 %v325, %v325
    %v338 = vsub.f32 %v334, %v336
    %v339 = vsub.f32 %v335, %v337
    %v340 = vmax.f32 %v338, 0.0
    %v341 = vmax.f32 %v339, 0.0
    %v342 = vsub.f32 %v316, %v324
    %v343 = vsub.f32 %v317, %v325
    %v344 = vadd.f32 %v340, 1e-05
    %v345 = vadd.f32 %v341, 1e-05
    %v346 = vrsqrt.pop %v344
    %v347 = vrsqrt.pop %v345
    %v348 = vmul.f32 %v342, %v346
    %v349 = vmul.f32 %v343, %v347
    %v350 = vmul.f32 %v348, %v296
    %v351 = vmul.f32 %v349, %v296
    %v352 = vadd.f32 %v350, %v304
    %v353 = vadd.f32 %v351, %v304
    %356 = vrot.lane.b32.xlu0 %v352, 32
    %v357 = vpop.permute.xlu0 %356
    %358 = vrot.lane.b32.xlu0 %v353, 32
    %v359 = vpop.permute.xlu0 %358
    %v362 = vsel %vm78, %v306, %v357
    %v363 = vsel %vm78, %v307, %v359
    %vm364 = vcmask 523264
    %365 = vst.msk [vmem:[#allocation8] sm:$0xff] %vm364, %v362
    %366 = vst.msk [vmem:[#allocation8 + $0x8] sm:$0xff] %vm364, %v363
    // Predicated region
    $region38: #{tpu_custom_call.1} parent=1 // pred_check
      _
    $region39: #{tpu_custom_call.1} parent=1 // pred_check_branch
      %368 = sbr.rel (0) target = $region41
    $region40: #{tpu_custom_call.1} parent=1 // pred_region
      %s370 = ssub.s32 256, 256
      %371 = vsyncadd [#allocation4], %s370
      %s372 = sshll.u32 [#allocation8], 4
      %s373 = int_to_ptr.vmem [resolvable:$true] %s372
      %378 = dma.vmem_to_hbm [thread:$0]  %s373, 256, %s6, [#allocation4], 128, 128, 8
    $region41: #{tpu_custom_call.1} parent=1 // pred_fallthru
      _
    // Predicated region
    $region42: #{tpu_custom_call.1} parent=1 // pred_check
      _
    $region43: #{tpu_custom_call.1} parent=1 // pred_check_branch
      %380 = sbr.rel (0) target = $region45
    $region44: #{tpu_custom_call.1} parent=1 // pred_region
      %381 = dma.done [#allocation4], 256
    $region45: #{tpu_custom_call.1} parent=1 // pred_fallthru
      _
    %382 = vsyncpa [#allocation3], 1
    %383 = vsyncpa [#allocation6], 1
    %384 = vsyncpa [#allocation4], 1

</llo_original>
